<compile_context>
chip_gen: v7x
topology: tpu7x:2x2x1
jax: 0.10.0
libtpu: 0.0.40
codegen_flags: <defaults>
</compile_context>

<pallas_src>
import jax
import jax.numpy as jnp
from jax import lax
from jax.experimental import pallas as pl
from jax.experimental.pallas import tpu as pltpu


def _head_proba_kernel(x_ref, w_ref, o_ref):
    # x_ref: (tm, emb) f32    w_ref: (emb, out) bf16    o_ref: (tm, out)
    # Pure MXU matmul: bf16 operands, f32 accumulation. The per-tile cast of x
    # is cheap VPU work hidden under the MXU; the weight is already bf16.
    o_ref[...] = jnp.dot(
        x_ref[...].astype(jnp.bfloat16),
        w_ref[...],
        preferred_element_type=jnp.float32,
    ).astype(o_ref.dtype)


def _head_proba_flat(flat_x, w_bf16, out_dtype):
    """flat_x: (M, emb) -> (M, out); w_bf16: (emb, out) pre-normalized weight."""
    M, emb = flat_x.shape
    out_dim = w_bf16.shape[1]

    # Row tile: large tiles fill the MXU, cut ~0.35us grid-step overhead and
    # enlarge DMAs. tm=1024 keeps the block footprint (~6.3 MiB at out=512)
    # inside v5e's 16 MiB default scope; for M > 1024 the grid has >= 2 steps,
    # so the parallel axis still shards across both v7x TensorCores.
    tm = M if M <= 1024 else 1024
    grid = (pl.cdiv(M, tm),)

    return pl.pallas_call(
        _head_proba_kernel,
        out_shape=jax.ShapeDtypeStruct((M, out_dim), out_dtype),
        grid_spec=pltpu.PrefetchScalarGridSpec(
            num_scalar_prefetch=0,
            grid=grid,
            in_specs=[
                pl.BlockSpec((tm, emb), lambda i: (i, 0)),
                # Grid-invariant weight: single-buffer it so the pipeline does
                # not burn VMEM double-buffering a constant.
                pl.BlockSpec((emb, out_dim), lambda i: (0, 0),
                             pipeline_mode=pl.Buffered(1)),
            ],
            out_specs=pl.BlockSpec((tm, out_dim), lambda i: (i, 0)),
        ),
        compiler_params=pltpu.CompilerParams(
            dimension_semantics=("parallel",),  # row tiles shard across TCs (v7x)
        ),
    )(flat_x, w_bf16)


def init_params(key, emb_dim=256, out_dim=512, dtype=jnp.float32):
    """Synthetic parameters matching HeadProba shapes.

    weight_v: Linear-style init, stored transposed as (emb_dim, out_dim).
    weight_g: filled with 1 (norm_last_layer=True -> frozen at 1).
    """
    bound = 1.0 / float(emb_dim) ** 0.5
    v = jax.random.uniform(key, (out_dim, emb_dim), minval=-bound, maxval=bound)
    return {
        "v_t": jnp.asarray(v.T, dtype),          # (emb_dim, out_dim)
        "g": jnp.ones((1, out_dim), dtype),      # weight_g (= 1, frozen)
    }


def _normalized_weight(params):
    """One-shot wrapper precompute: w = g * v / ||v||_2 (over emb), transposed."""
    v_t = params["v_t"]                                           # (emb, out)
    scale = params["g"] * lax.rsqrt(jnp.sum(v_t * v_t, axis=0, keepdims=True))
    return (v_t * scale).astype(jnp.bfloat16)                     # (emb, out) bf16


@jax.jit
def head_proba(params, x, out_dtype=None):
    """x: (..., emb_dim) -> (..., out_dim).  out_dtype defaults to x.dtype."""
    emb = x.shape[-1]
    flat = x.reshape(-1, emb)
    w_bf16 = _normalized_weight(params)          # hoisted weight-norm scale
    od = x.dtype if out_dtype is None else out_dtype
    out = _head_proba_flat(flat, w_bf16, od)
    return out.reshape(*x.shape[:-1], out.shape[-1])


def _reference(params, x):
    """Pure-JAX f32 reference: weight_norm linear, no bias (matches PyTorch)."""
    v_t = params["v_t"]
    norm = jnp.sqrt(jnp.sum(v_t * v_t, axis=0, keepdims=True))
    w = params["g"] * v_t / norm                 # (emb, out)
    return x @ w


if __name__ == "__main__":
    emb_dim, out_dim = 256, 512
    B, T = 2, 8

    key = jax.random.PRNGKey(0)
    kp, kx = jax.random.split(key)

    params = init_params(kp, emb_dim=emb_dim, out_dim=out_dim)
    x = jax.random.normal(kx, (B, T, emb_dim), dtype=jnp.float32)

    out = jax.block_until_ready(head_proba(params, x))
    ref = _reference(params, x)

    assert out.shape == (B, T, out_dim), out.shape
    # bf16 MXU operands (f32 accumulation) -> relaxed tolerance vs. f32 reference.
    assert jnp.allclose(out, ref, atol=3e-2, rtol=3e-2), float(
        jnp.max(jnp.abs(out - ref)))

    print("KERNEL_OK")
</pallas_src>

<mosaic_0001>
module attributes {stable_mosaic.version = 11 : i64} {
  func.func @_head_proba_kernel(%arg0: i32, %arg1: memref<16x256xf32, #tpu.memory_space<vmem>>, %arg2: memref<256x512xbf16, #tpu.memory_space<vmem>>, %arg3: memref<16x512xf32, #tpu.memory_space<vmem>>) attributes {dimension_semantics = [#tpu.dimension_semantics<parallel>], iteration_bounds = array<i64: 1>, scalar_prefetch = 0 : i64, scratch_operands = 0 : i64, tpu.core_type = #tpu.core_type<tc>, window_params = [{transform_indices = @transform_0, window_bounds = array<i64: 16, 256>}, {pipeline_mode = #tpu.pipeline_mode<synchronous>, transform_indices = @transform_1, window_bounds = array<i64: 256, 512>}, {transform_indices = @transform_2, window_bounds = array<i64: 16, 512>}]} {
    %c0 = arith.constant 0 : index
    %c0_0 = arith.constant 0 : index
    %0 = vector.load %arg1[%c0, %c0_0] : memref<16x256xf32, #tpu.memory_space<vmem>>, vector<16x256xf32>
    %1 = arith.truncf %0 : vector<16x256xf32> to vector<16x256xbf16>
    %c0_1 = arith.constant 0 : index
    %c0_2 = arith.constant 0 : index
    %2 = vector.load %arg2[%c0_1, %c0_2] : memref<256x512xbf16, #tpu.memory_space<vmem>>, vector<256x512xbf16>
    %cst = arith.constant dense<0.000000e+00> : vector<16x512xf32>
    %3 = tpu.matmul %1, %2, %cst {dimension_numbers = #tpu.dot_dimension_numbers<[1], [0], [0], [1], [0, 0, 1, 1], [], []>} : vector<16x256xbf16>, vector<256x512xbf16>, vector<16x512xf32> -> vector<16x512xf32>
    %c0_3 = arith.constant 0 : index
    %c0_4 = arith.constant 0 : index
    %4 = vector.load %arg3[%c0_3, %c0_4] : memref<16x512xf32, #tpu.memory_space<vmem>>, vector<16x512xf32>
    tpu.vector_store %arg3[%c0_3, %c0_4], %3 {strides = array<i32>} : memref<16x512xf32, #tpu.memory_space<vmem>>, vector<16x512xf32>,
    return
  }
  func.func @transform_0(%arg0: i32) -> (i32, i32) {
    %c0_i32 = arith.constant 0 : i32
    %c0_i32_0 = arith.constant 0 : i32
    return %arg0, %c0_i32 : i32, i32
  }
  func.func @transform_1(%arg0: i32) -> (i32, i32) {
    %c0_i32 = arith.constant 0 : i32
    %c0_i32_0 = arith.constant 0 : i32
    %c0_i32_1 = arith.constant 0 : i32
    return %c0_i32, %c0_i32_0 : i32, i32
  }
  func.func @transform_2(%arg0: i32) -> (i32, i32) {
    %c0_i32 = arith.constant 0 : i32
    %c0_i32_0 = arith.constant 0 : i32
    return %arg0, %c0_i32 : i32, i32
  }
}

</mosaic_0001>

<llo_original>
// kernel: mul.7
$region0: #{mul.7}
  #allocation0 [shape = 's32[1]{0}', space=sflag, size = 0x4, scoped, tag = 'scoped memory for mul.7']
  %s0 = inlined_call_operand.vmem [shape: f32[1,512], index: 0, kind: input, shape index: {}]
  %s1 = inlined_call_operand.vmem [shape: f32[1,512], index: 1, kind: input, shape index: {}]
  %s2 = inlined_call_operand.vmem [shape: f32[1,512], index: 2, kind: output, shape index: {}]
  %v3 = vld [vmem:[%s0] sm:$0x1]
  %v4 = vld [vmem:[%s1] sm:$0x1]
  %5 = xla_tuple %v3, %v4
  %6 = xla_tuple %5
  %v7 = vmul.f32 %v3, %v4
  %8 = xla_tuple %v7
  %9 = vst [vmem:[%s2] sm:$0x1] %v7
  %s10 = scalar_lea.vmem %s0, 1
  %v11 = vld [vmem:[%s10] sm:$0x1]
  %s12 = scalar_lea.vmem %s1, 1
  %v13 = vld [vmem:[%s12] sm:$0x1]
  %14 = xla_tuple %v11, %v13
  %15 = xla_tuple %14
  %v16 = vmul.f32 %v11, %v13
  %17 = xla_tuple %v16
  %s18 = scalar_lea.vmem %s2, 1
  %19 = vst [vmem:[%s18] sm:$0x1] %v16
  %s20 = scalar_lea.vmem %s0, 2
  %v21 = vld [vmem:[%s20] sm:$0x1]
  %s22 = scalar_lea.vmem %s1, 2
  %v23 = vld [vmem:[%s22] sm:$0x1]
  %24 = xla_tuple %v21, %v23
  %25 = xla_tuple %24
  %v26 = vmul.f32 %v21, %v23
  %27 = xla_tuple %v26
  %s28 = scalar_lea.vmem %s2, 2
  %29 = vst [vmem:[%s28] sm:$0x1] %v26
  %s30 = scalar_lea.vmem %s0, 3
  %v31 = vld [vmem:[%s30] sm:$0x1]
  %s32 = scalar_lea.vmem %s1, 3
  %v33 = vld [vmem:[%s32] sm:$0x1]
  %34 = xla_tuple %v31, %v33
  %35 = xla_tuple %34
  %v36 = vmul.f32 %v31, %v33
  %37 = xla_tuple %v36
  %s38 = scalar_lea.vmem %s2, 3
  %39 = vst [vmem:[%s38] sm:$0x1] %v36

// kernel: head_proba.1
$region0: #{head_proba.1}
  #allocation0 [shape = 'u32[]', space=smem, size = 0x4, offset = 0x4, fixed_abs, tag = 'smem constant byte address 0x4 - core index']
  #allocation1 [shape = 'u32[144,128]{1,0:T(1,128)}', space=vmem, size = 0x12000, scoped, tag = 'internal scratch']
  %s0 = inlined_call_operand.vmem [shape: f32[16,256], index: 0, kind: input, shape index: {}]
  %s1 = inlined_call_operand.vmem [shape: bf16[256,512], index: 1, kind: input, shape index: {}]
  %s2 = inlined_call_operand.hbm [shape: f32[16,512], index: 2, kind: output, shape index: {}]
  %s3 = sld [smem:[#allocation0]]
  $region18: #{head_proba.1} parent=0
    _
  %s5 = ssub.s32 1, %s3
  %s6 = scalar_select 0, %s5, %s3
  $region1: #{head_proba.1} parent=0
    #allocation2 [shape = 'u8[32768]{0}', space=vmem, size = 0x8000, scoped, tag = 'output window, operand 0, single buffered']
    #allocation3 [shape = 's32[1]{0}', space=sflag, size = 0x4, scoped, tag = 'scoped memory for head_proba.1']
    %7 = vsyncpa [#allocation3], 0
    // Predicated region
    $region2: #{head_proba.1} parent=1 // pred_check
      _
    $region3: #{head_proba.1} parent=1 // pred_check_branch
      %9 = sbr.rel (0) target = $region5
    $region4: #{head_proba.1} parent=1 // pred_region
      _
    $region5: #{head_proba.1} parent=1 // pred_fallthru
      _
    // Predicated region
    $region6: #{head_proba.1} parent=1 // pred_check
      _
    $region7: #{head_proba.1} parent=1 // pred_check_branch
      %11 = sbr.rel (0) target = $region9
    $region8: #{head_proba.1} parent=1 // pred_region
      _
    $region9: #{head_proba.1} parent=1 // pred_fallthru
      _
    %v12 = vld [vmem:[%s0] sm:$0xff]
    %v13 = vld [vmem:[%s0 + $0x8] sm:$0xff]
    %v14 = vld [vmem:[%s0 + $0x10] sm:$0xff]
    %v15 = vld [vmem:[%s0 + $0x18] sm:$0xff]
    %v16 = vpack.c.bf16 %v14, %v12
    %v17 = vpack.c.bf16 %v15, %v13
    %v18 = vld [vmem:[%s1] sm:$0xff]
    %v19 = vld [vmem:[%s1 + $0x8] sm:$0xff]
    %v20 = vld [vmem:[%s1 + $0x10] sm:$0xff]
    %v21 = vld [vmem:[%s1 + $0x18] sm:$0xff]
    %v22 = vld [vmem:[%s1 + $0x20] sm:$0xff]
    %v23 = vld [vmem:[%s1 + $0x28] sm:$0xff]
    %v24 = vld [vmem:[%s1 + $0x30] sm:$0xff]
    %v25 = vld [vmem:[%s1 + $0x38] sm:$0xff]
    %v26 = vld [vmem:[%s1 + $0x40] sm:$0xff]
    %v27 = vld [vmem:[%s1 + $0x48] sm:$0xff]
    %v28 = vld [vmem:[%s1 + $0x50] sm:$0xff]
    %v29 = vld [vmem:[%s1 + $0x58] sm:$0xff]
    %v30 = vld [vmem:[%s1 + $0x60] sm:$0xff]
    %v31 = vld [vmem:[%s1 + $0x68] sm:$0xff]
    %v32 = vld [vmem:[%s1 + $0x70] sm:$0xff]
    %v33 = vld [vmem:[%s1 + $0x78] sm:$0xff]
    %v34 = vld [vmem:[%s1 + $0x80] sm:$0xff]
    %v35 = vld [vmem:[%s1 + $0x88] sm:$0xff]
    %v36 = vld [vmem:[%s1 + $0x90] sm:$0xff]
    %v37 = vld [vmem:[%s1 + $0x98] sm:$0xff]
    %v38 = vld [vmem:[%s1 + $0xa0] sm:$0xff]
    %v39 = vld [vmem:[%s1 + $0xa8] sm:$0xff]
    %v40 = vld [vmem:[%s1 + $0xb0] sm:$0xff]
    %v41 = vld [vmem:[%s1 + $0xb8] sm:$0xff]
    %v42 = vld [vmem:[%s1 + $0xc0] sm:$0xff]
    %v43 = vld [vmem:[%s1 + $0xc8] sm:$0xff]
    %v44 = vld [vmem:[%s1 + $0xd0] sm:$0xff]
    %v45 = vld [vmem:[%s1 + $0xd8] sm:$0xff]
    %v46 = vld [vmem:[%s1 + $0xe0] sm:$0xff]
    %v47 = vld [vmem:[%s1 + $0xe8] sm:$0xff]
    %v48 = vld [vmem:[%s1 + $0xf0] sm:$0xff]
    %v49 = vld [vmem:[%s1 + $0xf8] sm:$0xff]
    %v50 = vld [vmem:[%s1 + $0x100] sm:$0xff]
    %v51 = vld [vmem:[%s1 + $0x108] sm:$0xff]
    %v52 = vld [vmem:[%s1 + $0x110] sm:$0xff]
    %v53 = vld [vmem:[%s1 + $0x118] sm:$0xff]
    %v54 = vld [vmem:[%s1 + $0x120] sm:$0xff]
    %v55 = vld [vmem:[%s1 + $0x128] sm:$0xff]
    %v56 = vld [vmem:[%s1 + $0x130] sm:$0xff]
    %v57 = vld [vmem:[%s1 + $0x138] sm:$0xff]
    %v58 = vld [vmem:[%s1 + $0x140] sm:$0xff]
    %v59 = vld [vmem:[%s1 + $0x148] sm:$0xff]
    %v60 = vld [vmem:[%s1 + $0x150] sm:$0xff]
    %v61 = vld [vmem:[%s1 + $0x158] sm:$0xff]
    %v62 = vld [vmem:[%s1 + $0x160] sm:$0xff]
    %v63 = vld [vmem:[%s1 + $0x168] sm:$0xff]
    %v64 = vld [vmem:[%s1 + $0x170] sm:$0xff]
    %v65 = vld [vmem:[%s1 + $0x178] sm:$0xff]
    %v66 = vld [vmem:[%s1 + $0x180] sm:$0xff]
    %v67 = vld [vmem:[%s1 + $0x188] sm:$0xff]
    %v68 = vld [vmem:[%s1 + $0x190] sm:$0xff]
    %v69 = vld [vmem:[%s1 + $0x198] sm:$0xff]
    %v70 = vld [vmem:[%s1 + $0x1a0] sm:$0xff]
    %v71 = vld [vmem:[%s1 + $0x1a8] sm:$0xff]
    %v72 = vld [vmem:[%s1 + $0x1b0] sm:$0xff]
    %v73 = vld [vmem:[%s1 + $0x1b8] sm:$0xff]
    %v74 = vld [vmem:[%s1 + $0x1c0] sm:$0xff]
    %v75 = vld [vmem:[%s1 + $0x1c8] sm:$0xff]
    %v76 = vld [vmem:[%s1 + $0x1d0] sm:$0xff]
    %v77 = vld [vmem:[%s1 + $0x1d8] sm:$0xff]
    %v78 = vld [vmem:[%s1 + $0x1e0] sm:$0xff]
    %v79 = vld [vmem:[%s1 + $0x1e8] sm:$0xff]
    %v80 = vld [vmem:[%s1 + $0x1f0] sm:$0xff]
    %v81 = vld [vmem:[%s1 + $0x1f8] sm:$0xff]
    %v146 = vunpack.c.l.b16 %v18
    %v147 = vunpack.c.h.b16 %v18
    %v148 = vunpack.c.l.b16 %v19
    %v149 = vunpack.c.h.b16 %v19
    %v150 = vunpack.c.l.b16 %v20
    %v151 = vunpack.c.h.b16 %v20
    %v152 = vunpack.c.l.b16 %v21
    %v153 = vunpack.c.h.b16 %v21
    %v154 = vunpack.c.l.b16 %v22
    %v155 = vunpack.c.h.b16 %v22
    %v156 = vunpack.c.l.b16 %v23
    %v157 = vunpack.c.h.b16 %v23
    %v158 = vunpack.c.l.b16 %v24
    %v159 = vunpack.c.h.b16 %v24
    %v160 = vunpack.c.l.b16 %v25
    %v161 = vunpack.c.h.b16 %v25
    %v162 = vunpack.c.l.b16 %v26
    %v163 = vunpack.c.h.b16 %v26
    %v164 = vunpack.c.l.b16 %v27
    %v165 = vunpack.c.h.b16 %v27
    %v166 = vunpack.c.l.b16 %v28
    %v167 = vunpack.c.h.b16 %v28
    %v168 = vunpack.c.l.b16 %v29
    %v169 = vunpack.c.h.b16 %v29
    %v170 = vunpack.c.l.b16 %v30
    %v171 = vunpack.c.h.b16 %v30
    %v172 = vunpack.c.l.b16 %v31
    %v173 = vunpack.c.h.b16 %v31
    %v174 = vunpack.c.l.b16 %v32
    %v175 = vunpack.c.h.b16 %v32
    %v176 = vunpack.c.l.b16 %v33
    %v177 = vunpack.c.h.b16 %v33
    %v178 = vunpack.c.l.b16 %v34
    %v179 = vunpack.c.h.b16 %v34
    %v180 = vunpack.c.l.b16 %v35
    %v181 = vunpack.c.h.b16 %v35
    %v182 = vunpack.c.l.b16 %v36
    %v183 = vunpack.c.h.b16 %v36
    %v184 = vunpack.c.l.b16 %v37
    %v185 = vunpack.c.h.b16 %v37
    %v186 = vunpack.c.l.b16 %v38
    %v187 = vunpack.c.h.b16 %v38
    %v188 = vunpack.c.l.b16 %v39
    %v189 = vunpack.c.h.b16 %v39
    %v190 = vunpack.c.l.b16 %v40
    %v191 = vunpack.c.h.b16 %v40
    %v192 = vunpack.c.l.b16 %v41
    %v193 = vunpack.c.h.b16 %v41
    %v194 = vunpack.c.l.b16 %v42
    %v195 = vunpack.c.h.b16 %v42
    %v196 = vunpack.c.l.b16 %v43
    %v197 = vunpack.c.h.b16 %v43
    %v198 = vunpack.c.l.b16 %v44
    %v199 = vunpack.c.h.b16 %v44
    %v200 = vunpack.c.l.b16 %v45
    %v201 = vunpack.c.h.b16 %v45
    %v202 = vunpack.c.l.b16 %v46
    %v203 = vunpack.c.h.b16 %v46
    %v204 = vunpack.c.l.b16 %v47
    %v205 = vunpack.c.h.b16 %v47
    %v206 = vunpack.c.l.b16 %v48
    %v207 = vunpack.c.h.b16 %v48
    %v208 = vunpack.c.l.b16 %v49
    %v209 = vunpack.c.h.b16 %v49
    %v210 = vunpack.c.l.b16 %v50
    %v211 = vunpack.c.h.b16 %v50
    %v212 = vunpack.c.l.b16 %v51
    %v213 = vunpack.c.h.b16 %v51
    %v214 = vunpack.c.l.b16 %v52
    %v215 = vunpack.c.h.b16 %v52
    %v216 = vunpack.c.l.b16 %v53
    %v217 = vunpack.c.h.b16 %v53
    %v218 = vunpack.c.l.b16 %v54
    %v219 = vunpack.c.h.b16 %v54
    %v220 = vunpack.c.l.b16 %v55
    %v221 = vunpack.c.h.b16 %v55
    %v222 = vunpack.c.l.b16 %v56
    %v223 = vunpack.c.h.b16 %v56
    %v224 = vunpack.c.l.b16 %v57
    %v225 = vunpack.c.h.b16 %v57
    %v226 = vunpack.c.l.b16 %v58
    %v227 = vunpack.c.h.b16 %v58
    %v228 = vunpack.c.l.b16 %v59
    %v229 = vunpack.c.h.b16 %v59
    %v230 = vunpack.c.l.b16 %v60
    %v231 = vunpack.c.h.b16 %v60
    %v232 = vunpack.c.l.b16 %v61
    %v233 = vunpack.c.h.b16 %v61
    %v234 = vunpack.c.l.b16 %v62
    %v235 = vunpack.c.h.b16 %v62
    %v236 = vunpack.c.l.b16 %v63
    %v237 = vunpack.c.h.b16 %v63
    %v238 = vunpack.c.l.b16 %v64
    %v239 = vunpack.c.h.b16 %v64
    %v240 = vunpack.c.l.b16 %v65
    %v241 = vunpack.c.h.b16 %v65
    %v242 = vunpack.c.l.b16 %v66
    %v243 = vunpack.c.h.b16 %v66
    %v244 = vunpack.c.l.b16 %v67
    %v245 = vunpack.c.h.b16 %v67
    %v246 = vunpack.c.l.b16 %v68
    %v247 = vunpack.c.h.b16 %v68
    %v248 = vunpack.c.l.b16 %v69
    %v249 = vunpack.c.h.b16 %v69
    %v250 = vunpack.c.l.b16 %v70
    %v251 = vunpack.c.h.b16 %v70
    %v252 = vunpack.c.l.b16 %v71
    %v253 = vunpack.c.h.b16 %v71
    %v254 = vunpack.c.l.b16 %v72
    %v255 = vunpack.c.h.b16 %v72
    %v256 = vunpack.c.l.b16 %v73
    %v257 = vunpack.c.h.b16 %v73
    %v258 = vunpack.c.l.b16 %v74
    %v259 = vunpack.c.h.b16 %v74
    %v260 = vunpack.c.l.b16 %v75
    %v261 = vunpack.c.h.b16 %v75
    %v262 = vunpack.c.l.b16 %v76
    %v263 = vunpack.c.h.b16 %v76
    %v264 = vunpack.c.l.b16 %v77
    %v265 = vunpack.c.h.b16 %v77
    %v266 = vunpack.c.l.b16 %v78
    %v267 = vunpack.c.h.b16 %v78
    %v268 = vunpack.c.l.b16 %v79
    %v269 = vunpack.c.h.b16 %v79
    %v270 = vunpack.c.l.b16 %v80
    %v271 = vunpack.c.h.b16 %v80
    %v272 = vunpack.c.l.b16 %v81
    %v273 = vunpack.c.h.b16 %v81
    %v274 = vpack.c.b16 %v150, %v146
    %v275 = vpack.c.b16 %v151, %v147
    %v276 = vpack.c.b16 %v152, %v148
    %v277 = vpack.c.b16 %v153, %v149
    %v278 = vpack.c.b16 %v158, %v154
    %v279 = vpack.c.b16 %v159, %v155
    %v280 = vpack.c.b16 %v160, %v156
    %v281 = vpack.c.b16 %v161, %v157
    %v282 = vpack.c.b16 %v166, %v162
    %v283 = vpack.c.b16 %v167, %v163
    %v284 = vpack.c.b16 %v168, %v164
    %v285 = vpack.c.b16 %v169, %v165
    %v286 = vpack.c.b16 %v174, %v170
    %v287 = vpack.c.b16 %v175, %v171
    %v288 = vpack.c.b16 %v176, %v172
    %v289 = vpack.c.b16 %v177, %v173
    %v290 = vpack.c.b16 %v182, %v178
    %v291 = vpack.c.b16 %v183, %v179
    %v292 = vpack.c.b16 %v184, %v180
    %v293 = vpack.c.b16 %v185, %v181
    %v294 = vpack.c.b16 %v190, %v186
    %v295 = vpack.c.b16 %v191, %v187
    %v296 = vpack.c.b16 %v192, %v188
    %v297 = vpack.c.b16 %v193, %v189
    %v298 = vpack.c.b16 %v198, %v194
    %v299 = vpack.c.b16 %v199, %v195
    %v300 = vpack.c.b16 %v200, %v196
    %v301 = vpack.c.b16 %v201, %v197
    %v302 = vpack.c.b16 %v206, %v202
    %v303 = vpack.c.b16 %v207, %v203
    %v304 = vpack.c.b16 %v208, %v204
    %v305 = vpack.c.b16 %v209, %v205
    %v306 = vpack.c.b16 %v214, %v210
    %v307 = vpack.c.b16 %v215, %v211
    %v308 = vpack.c.b16 %v216, %v212
    %v309 = vpack.c.b16 %v217, %v213
    %v310 = vpack.c.b16 %v222, %v218
    %v311 = vpack.c.b16 %v223, %v219
    %v312 = vpack.c.b16 %v224, %v220
    %v313 = vpack.c.b16 %v225, %v221
    %v314 = vpack.c.b16 %v230, %v226
    %v315 = vpack.c.b16 %v231, %v227
    %v316 = vpack.c.b16 %v232, %v228
    %v317 = vpack.c.b16 %v233, %v229
    %v318 = vpack.c.b16 %v238, %v234
    %v319 = vpack.c.b16 %v239, %v235
    %v320 = vpack.c.b16 %v240, %v236
    %v321 = vpack.c.b16 %v241, %v237
    %v322 = vpack.c.b16 %v246, %v242
    %v323 = vpack.c.b16 %v247, %v243
    %v324 = vpack.c.b16 %v248, %v244
    %v325 = vpack.c.b16 %v249, %v245
    %v326 = vpack.c.b16 %v254, %v250
    %v327 = vpack.c.b16 %v255, %v251
    %v328 = vpack.c.b16 %v256, %v252
    %v329 = vpack.c.b16 %v257, %v253
    %v330 = vpack.c.b16 %v262, %v258
    %v331 = vpack.c.b16 %v263, %v259
    %v332 = vpack.c.b16 %v264, %v260
    %v333 = vpack.c.b16 %v265, %v261
    %v334 = vpack.c.b16 %v270, %v266
    %v335 = vpack.c.b16 %v271, %v267
    %v336 = vpack.c.b16 %v272, %v268
    %v337 = vpack.c.b16 %v273, %v269
    %402 = vmatprep.subr.bf16.mxu0 %v275
    %403 = vmatpush1.bf16.msra.mxu0 %v274
    %404 = vmatprep.subr.bf16.mxu0 %v279
    %405 = vmatpush1.bf16.msra.mxu0 %v278
    %406 = vmatprep.subr.bf16.mxu0 %v283
    %407 = vmatpush1.bf16.msra.mxu0 %v282
    %408 = vmatprep.subr.bf16.mxu0 %v287
    %409 = vmatpush1.bf16.msra.mxu0 %v286
    %410 = vmatprep.subr.bf16.mxu0 %v291
    %411 = vmatpush1.bf16.msra.mxu0 %v290
    %412 = vmatprep.subr.bf16.mxu0 %v295
    %413 = vmatpush1.bf16.msra.mxu0 %v294
    %414 = vmatprep.subr.bf16.mxu0 %v299
    %415 = vmatpush1.bf16.msra.mxu0 %v298
    %416 = vmatprep.subr.bf16.mxu0 %v303
    %417 = vmatpush1.bf16.msra.mxu0 %v302
    %418 = vmatprep.subr.bf16.mxu0 %v307
    %419 = vmatpush1.bf16.msra.mxu0 %v306
    %420 = vmatprep.subr.bf16.mxu0 %v311
    %421 = vmatpush1.bf16.msra.mxu0 %v310
    %422 = vmatprep.subr.bf16.mxu0 %v315
    %423 = vmatpush1.bf16.msra.mxu0 %v314
    %424 = vmatprep.subr.bf16.mxu0 %v319
    %425 = vmatpush1.bf16.msra.mxu0 %v318
    %426 = vmatprep.subr.bf16.mxu0 %v323
    %427 = vmatpush1.bf16.msra.mxu0 %v322
    %428 = vmatprep.subr.bf16.mxu0 %v327
    %429 = vmatpush1.bf16.msra.mxu0 %v326
    %430 = vmatprep.subr.bf16.mxu0 %v331
    %431 = vmatpush1.bf16.msra.mxu0 %v330
    %432 = vmatprep.subr.bf16.mxu0 %v335
    %433 = vmatpush1.bf16.msra.mxu0 %v334
    %434 = vmatprep.mubr.bf16.mxu0 %v17
    %435 = vmatmul.mubr.bf16.gmra.mrb[0].mxu0 %v16
    %v436 = vpop.f32.mrb[0].mxu0
    %v437 = vadd.f32 0.0, %v436
    %v438 = vpop.f32.mrb[0].mxu0
    %v439 = vadd.f32 0.0, %v438
    %v440 = vpop.f32.mrb[0].mxu0
    %v441 = vadd.f32 0.0, %v440
    %v442 = vpop.f32.mrb[0].mxu0
    %v443 = vadd.f32 0.0, %v442
    %444 = vdwg.mxu0
    %445 = vmatprep.subr.bf16.mxu0 %v277
    %446 = vmatpush1.bf16.msra.mxu0 %v276
    %447 = vmatprep.subr.bf16.mxu0 %v281
    %448 = vmatpush1.bf16.msra.mxu0 %v280
    %449 = vmatprep.subr.bf16.mxu0 %v285
    %450 = vmatpush1.bf16.msra.mxu0 %v284
    %451 = vmatprep.subr.bf16.mxu0 %v289
    %452 = vmatpush1.bf16.msra.mxu0 %v288
    %453 = vmatprep.subr.bf16.mxu0 %v293
    %454 = vmatpush1.bf16.msra.mxu0 %v292
    %455 = vmatprep.subr.bf16.mxu0 %v297
    %456 = vmatpush1.bf16.msra.mxu0 %v296
    %457 = vmatprep.subr.bf16.mxu0 %v301
    %458 = vmatpush1.bf16.msra.mxu0 %v300
    %459 = vmatprep.subr.bf16.mxu0 %v305
    %460 = vmatpush1.bf16.msra.mxu0 %v304
    %461 = vmatprep.subr.bf16.mxu0 %v309
    %462 = vmatpush1.bf16.msra.mxu0 %v308
    %463 = vmatprep.subr.bf16.mxu0 %v313
    %464 = vmatpush1.bf16.msra.mxu0 %v312
    %465 = vmatprep.subr.bf16.mxu0 %v317
    %466 = vmatpush1.bf16.msra.mxu0 %v316
    %467 = vmatprep.subr.bf16.mxu0 %v321
    %468 = vmatpush1.bf16.msra.mxu0 %v320
    %469 = vmatprep.subr.bf16.mxu0 %v325
    %470 = vmatpush1.bf16.msra.mxu0 %v324
    %471 = vmatprep.subr.bf16.mxu0 %v329
    %472 = vmatpush1.bf16.msra.mxu0 %v328
    %473 = vmatprep.subr.bf16.mxu0 %v333
    %474 = vmatpush1.bf16.msra.mxu0 %v332
    %475 = vmatprep.subr.bf16.mxu0 %v337
    %476 = vmatpush1.bf16.msra.mxu0 %v336
    %477 = vmatprep.mubr.bf16.mxu0 %v17
    %478 = vmatmul.mubr.bf16.gmra.mrb[0].mxu0 %v16
    %v479 = vpop.f32.mrb[0].mxu0
    %v480 = vadd.f32 0.0, %v479
    %v481 = vpop.f32.mrb[0].mxu0
    %v482 = vadd.f32 0.0, %v481
    %v483 = vpop.f32.mrb[0].mxu0
    %v484 = vadd.f32 0.0, %v483
    %v485 = vpop.f32.mrb[0].mxu0
    %v486 = vadd.f32 0.0, %v485
    %487 = vdwg.mxu0
    %488 = vst [vmem:[#allocation2] sm:$0xff] %v437
    %489 = vst [vmem:[#allocation2 + $0x8] sm:$0xff] %v439
    %490 = vst [vmem:[#allocation2 + $0x10] sm:$0xff] %v480
    %491 = vst [vmem:[#allocation2 + $0x18] sm:$0xff] %v482
    %492 = vst [vmem:[#allocation2 + $0x20] sm:$0xff] %v441
    %493 = vst [vmem:[#allocation2 + $0x28] sm:$0xff] %v443
    %494 = vst [vmem:[#allocation2 + $0x30] sm:$0xff] %v484
    %495 = vst [vmem:[#allocation2 + $0x38] sm:$0xff] %v486
    // Predicated region
    $region10: #{head_proba.1} parent=1 // pred_check
      _
    $region11: #{head_proba.1} parent=1 // pred_check_branch
      %497 = sbr.rel (0) target = $region13
    $region12: #{head_proba.1} parent=1 // pred_region
      %s499 = ssub.s32 1024, 1024
      %500 = vsyncadd [#allocation3], %s499
      %s501 = sshll.u32 [#allocation2], 4
      %s502 = int_to_ptr.vmem [resolvable:$true] %s501
      %507 = dma.vmem_to_hbm [thread:$0]  %s502, 1024, %s2, [#allocation3], 512, 512, 32
    $region13: #{head_proba.1} parent=1 // pred_fallthru
      _
    // Predicated region
    $region14: #{head_proba.1} parent=1 // pred_check
      _
    $region15: #{head_proba.1} parent=1 // pred_check_branch
      %509 = sbr.rel (0) target = $region17
    $region16: #{head_proba.1} parent=1 // pred_region
      %510 = dma.done [#allocation3], 1024
    $region17: #{head_proba.1} parent=1 // pred_fallthru
      _
    %511 = vsyncpa [#allocation3], 1

</llo_original>
